<compile_context>
chip_gen: v5e
topology: v5e:2x2
jax: 0.10.0
libtpu: 0.0.40
codegen_flags: <defaults>
</compile_context>

<pallas_src>
import numpy as np
import jax
import jax.numpy as jnp
from jax.experimental import pallas as pl
from jax.experimental.pallas import tpu as pltpu

HIDDEN = 128
LANES = 128


# ----------------------------------------------------------------------------
# Parameter init (mimics torch.nn.init.orthogonal_ + constant_(0))
# ----------------------------------------------------------------------------
def _orthogonal(key, out_features, in_features, gain):
    rows, cols = out_features, in_features
    flat = jax.random.normal(key, (rows, cols), dtype=jnp.float32)
    if rows < cols:
        flat = flat.T
    q, r = jnp.linalg.qr(flat)
    d = jnp.sign(jnp.diagonal(r))
    q = q * d[None, :]
    if rows < cols:
        q = q.T
    return gain * q  # (out_features, in_features)


def _round_up(x, m):
    return ((x + m - 1) // m) * m


def init_soft_q_params(state_dim, action_dim, n_critics=2, seed=0):
    """Stacked params for `n_critics` independent SoftQNetworks.

    Weights are stored transposed ((in, out) so the kernel computes x @ W + b,
    matching PyTorch's x @ W_pt.T + b) and cast to bf16 for the MXU.  The last
    layer is zero-padded to a lane-dense, LANES-wide output.
    """
    n_pad = max(LANES, _round_up(action_dim, LANES))
    std = float(np.sqrt(2.0))
    w1, w2, w3, b1, b2, b3 = [], [], [], [], [], []
    key = jax.random.PRNGKey(seed)
    for _ in range(n_critics):
        key, k1, k2, k3 = jax.random.split(key, 4)
        w1.append(_orthogonal(k1, HIDDEN, state_dim, std).T)   # (state_dim, 128)
        w2.append(_orthogonal(k2, HIDDEN, HIDDEN, std).T)      # (128, 128)
        w3c = _orthogonal(k3, action_dim, HIDDEN, 1.0).T       # (128, action_dim)
        w3.append(jnp.pad(w3c, ((0, 0), (0, n_pad - action_dim))))
        b1.append(jnp.zeros((1, HIDDEN), jnp.float32))
        b2.append(jnp.zeros((1, HIDDEN), jnp.float32))
        b3.append(jnp.zeros((1, n_pad), jnp.float32))
    return dict(
        w1=jnp.stack(w1).astype(jnp.bfloat16),   # (C, state_dim, 128)
        w2=jnp.stack(w2).astype(jnp.bfloat16),   # (C, 128, 128)
        w3=jnp.stack(w3).astype(jnp.bfloat16),   # (C, 128, n_pad)
        b1=jnp.stack(b1), b2=jnp.stack(b2), b3=jnp.stack(b3),  # f32
        action_dim=action_dim,
    )


# ----------------------------------------------------------------------------
# Pallas kernel: fused 3-layer MLP for one (critic, batch-tile) grid point
# ----------------------------------------------------------------------------
def soft_q_kernel(x_ref, w1_ref, b1_ref, w2_ref, b2_ref, w3_ref, b3_ref, o_ref):
    # x: (tm, state_dim) f32; w*: bf16 (in, out); b*: (1, out) f32;
    # o: (tm, LANES-padded) f32.  Matmuls run bf16 on the MXU with f32
    # accumulation; bias add + tanh stay in f32 on VPU/EUP.
    x = x_ref[...].astype(jnp.bfloat16)
    h1 = jnp.tanh(
        jnp.dot(x, w1_ref[...], preferred_element_type=jnp.float32) + b1_ref[...]
    )
    h2 = jnp.tanh(
        jnp.dot(h1.astype(jnp.bfloat16), w2_ref[...],
                preferred_element_type=jnp.float32) + b2_ref[...]
    )
    o_ref[...] = (
        jnp.dot(h2.astype(jnp.bfloat16), w3_ref[...],
                preferred_element_type=jnp.float32) + b3_ref[...]
    )


# ----------------------------------------------------------------------------
# Wrapper: one pallas_call for ALL critics and the WHOLE batch
# ----------------------------------------------------------------------------
def soft_q_forward(x, params, *, tm=None):
    """x: (B, state_dim) f32 -> (n_critics, B, action_dim) f32."""
    B, state_dim = x.shape
    action_dim = params["action_dim"]
    n_critics = params["w1"].shape[0]
    n_pad = params["w3"].shape[-1]

    # Batch tile: multiple of 8 (f32 sublane), capped at 512 (well inside the
    # v7x 64 MiB/TC VMEM budget; raise toward 2048-8192 for huge batches).
    if tm is None:
        tm = min(512, _round_up(B, 8))
    tm = _round_up(tm, 8)
    B_pad = _round_up(B, tm)
    if B_pad != B:
        x = jnp.pad(x, ((0, B_pad - B), (0, 0)))

    grid = (n_critics, B_pad // tm)

    flops = 2 * n_critics * B_pad * (
        state_dim * HIDDEN + HIDDEN * HIDDEN + HIDDEN * n_pad)
    transcendentals = n_critics * B_pad * 2 * HIDDEN
    bytes_accessed = (
        n_critics * B_pad * state_dim * 4                       # x (per critic)
        + 2 * n_critics * (state_dim * HIDDEN + HIDDEN * HIDDEN
                           + HIDDEN * n_pad)                    # bf16 weights
        + 4 * n_critics * (HIDDEN + HIDDEN + n_pad)             # f32 biases
        + 4 * n_critics * B_pad * n_pad                         # output
    )

    out = pl.pallas_call(
        soft_q_kernel,
        out_shape=jax.ShapeDtypeStruct((n_critics, B_pad, n_pad), jnp.float32),
        grid_spec=pltpu.PrefetchScalarGridSpec(
            num_scalar_prefetch=0,
            grid=grid,
            in_specs=[
                # x is shared by both critics; tiled over the batch axis.
                pl.BlockSpec((tm, state_dim), lambda c, i: (i, 0)),
                # Per-critic weights/biases stay VMEM-resident across batch tiles.
                pl.BlockSpec((None, state_dim, HIDDEN), lambda c, i: (c, 0, 0)),
                pl.BlockSpec((None, 1, HIDDEN), lambda c, i: (c, 0, 0)),
                pl.BlockSpec((None, HIDDEN, HIDDEN), lambda c, i: (c, 0, 0)),
                pl.BlockSpec((None, 1, HIDDEN), lambda c, i: (c, 0, 0)),
                pl.BlockSpec((None, HIDDEN, n_pad), lambda c, i: (c, 0, 0)),
                pl.BlockSpec((None, 1, n_pad), lambda c, i: (c, 0, 0)),
            ],
            out_specs=pl.BlockSpec((None, tm, n_pad), lambda c, i: (c, i, 0)),
        ),
        compiler_params=pltpu.CompilerParams(
            dimension_semantics=("parallel", "parallel"),
        ),
        cost_estimate=pl.CostEstimate(
            flops=flops,
            transcendentals=transcendentals,
            bytes_accessed=bytes_accessed,
        ),
    )(x, params["w1"], params["b1"], params["w2"], params["b2"],
      params["w3"], params["b3"])

    return out[:, :B, :action_dim]  # (n_critics, B, action_dim)


# ----------------------------------------------------------------------------
# Pure-JAX reference (same bf16-matmul / f32-accumulate recipe, no Pallas)
# ----------------------------------------------------------------------------
def soft_q_ref(x, params):
    outs = []
    for c in range(params["w1"].shape[0]):
        h1 = jnp.tanh(jnp.dot(x.astype(jnp.bfloat16), params["w1"][c],
                              preferred_element_type=jnp.float32) + params["b1"][c])
        h2 = jnp.tanh(jnp.dot(h1.astype(jnp.bfloat16), params["w2"][c],
                              preferred_element_type=jnp.float32) + params["b2"][c])
        q = jnp.dot(h2.astype(jnp.bfloat16), params["w3"][c],
                    preferred_element_type=jnp.float32) + params["b3"][c]
        outs.append(q[:, :params["action_dim"]])
    return jnp.stack(outs)


if __name__ == "__main__":
    state_dim, action_dim, batch, n_critics = 16, 8, 256, 2
    params = init_soft_q_params(state_dim, action_dim, n_critics=n_critics, seed=0)

    x = jax.random.normal(jax.random.PRNGKey(0), (batch, state_dim),
                          dtype=jnp.float32)

    q = jax.block_until_ready(soft_q_forward(x, params))   # (2, 256, 8)

    q_ref = soft_q_ref(x, params)
    np.testing.assert_allclose(np.asarray(q), np.asarray(q_ref),
                               rtol=5e-3, atol=5e-3)
    assert q.shape == (n_critics, batch, action_dim)
    print("KERNEL_OK")
</pallas_src>

<mosaic_0001>
module attributes {stable_mosaic.version = 11 : i64} {
  func.func @soft_q_kernel(%arg0: i32, %arg1: i32, %arg2: memref<256x16xf32, #tpu.memory_space<vmem>>, %arg3: memref<1x16x128xbf16, #tpu.memory_space<vmem>>, %arg4: memref<1x1x128xf32, #tpu.memory_space<vmem>>, %arg5: memref<1x128x128xbf16, #tpu.memory_space<vmem>>, %arg6: memref<1x1x128xf32, #tpu.memory_space<vmem>>, %arg7: memref<1x128x128xbf16, #tpu.memory_space<vmem>>, %arg8: memref<1x1x128xf32, #tpu.memory_space<vmem>>, %arg9: memref<1x256x128xf32, #tpu.memory_space<vmem>>) attributes {dimension_semantics = [#tpu.dimension_semantics<parallel>, #tpu.dimension_semantics<parallel>], iteration_bounds = array<i64: 2, 1>, scalar_prefetch = 0 : i64, scratch_operands = 0 : i64, tpu.core_type = #tpu.core_type<tc>, window_params = [{transform_indices = @transform_0, window_bounds = array<i64: 256, 16>}, {transform_indices = @transform_1, window_bounds = array<i64: 1, 16, 128>}, {transform_indices = @transform_2, window_bounds = array<i64: 1, 1, 128>}, {transform_indices = @transform_3, window_bounds = array<i64: 1, 128, 128>}, {transform_indices = @transform_4, window_bounds = array<i64: 1, 1, 128>}, {transform_indices = @transform_5, window_bounds = array<i64: 1, 128, 128>}, {transform_indices = @transform_6, window_bounds = array<i64: 1, 1, 128>}, {transform_indices = @transform_7, window_bounds = array<i64: 1, 256, 128>}]} {
    %c0 = arith.constant 0 : index
    %c0_0 = arith.constant 0 : index
    %0 = vector.load %arg2[%c0, %c0_0] : memref<256x16xf32, #tpu.memory_space<vmem>>, vector<256x16xf32>
    %1 = arith.truncf %0 : vector<256x16xf32> to vector<256x16xbf16>
    %c0_1 = arith.constant 0 : index
    %c0_2 = arith.constant 0 : index
    %c0_3 = arith.constant 0 : index
    %2 = vector.load %arg3[%c0_1, %c0_2, %c0_3] : memref<1x16x128xbf16, #tpu.memory_space<vmem>>, vector<1x16x128xbf16>
    %3 = vector.shape_cast %2 : vector<1x16x128xbf16> to vector<16x128xbf16>
    %cst = arith.constant dense<0.000000e+00> : vector<256x128xf32>
    %4 = tpu.matmul %1, %3, %cst {dimension_numbers = #tpu.dot_dimension_numbers<[1], [0], [0], [1], [0, 0, 1, 1], [], []>} : vector<256x16xbf16>, vector<16x128xbf16>, vector<256x128xf32> -> vector<256x128xf32>
    %c0_4 = arith.constant 0 : index
    %c0_5 = arith.constant 0 : index
    %c0_6 = arith.constant 0 : index
    %5 = vector.load %arg4[%c0_4, %c0_5, %c0_6] : memref<1x1x128xf32, #tpu.memory_space<vmem>>, vector<1x1x128xf32>
    %6 = vector.shape_cast %5 : vector<1x1x128xf32> to vector<1x128xf32>
    %7 = vector.broadcast %6 : vector<1x128xf32> to vector<256x128xf32>
    %8 = arith.addf %4, %7 : vector<256x128xf32>
    %9 = math.tanh %8 : vector<256x128xf32>
    %10 = arith.truncf %9 : vector<256x128xf32> to vector<256x128xbf16>
    %c0_7 = arith.constant 0 : index
    %c0_8 = arith.constant 0 : index
    %c0_9 = arith.constant 0 : index
    %11 = vector.load %arg5[%c0_7, %c0_8, %c0_9] : memref<1x128x128xbf16, #tpu.memory_space<vmem>>, vector<1x128x128xbf16>
    %12 = vector.shape_cast %11 : vector<1x128x128xbf16> to vector<128x128xbf16>
    %cst_10 = arith.constant dense<0.000000e+00> : vector<256x128xf32>
    %13 = tpu.matmul %10, %12, %cst_10 {dimension_numbers = #tpu.dot_dimension_numbers<[1], [0], [0], [1], [0, 0, 1, 1], [], []>} : vector<256x128xbf16>, vector<128x128xbf16>, vector<256x128xf32> -> vector<256x128xf32>
    %c0_11 = arith.constant 0 : index
    %c0_12 = arith.constant 0 : index
    %c0_13 = arith.constant 0 : index
    %14 = vector.load %arg6[%c0_11, %c0_12, %c0_13] : memref<1x1x128xf32, #tpu.memory_space<vmem>>, vector<1x1x128xf32>
    %15 = vector.shape_cast %14 : vector<1x1x128xf32> to vector<1x128xf32>
    %16 = vector.broadcast %15 : vector<1x128xf32> to vector<256x128xf32>
    %17 = arith.addf %13, %16 : vector<256x128xf32>
    %18 = math.tanh %17 : vector<256x128xf32>
    %19 = arith.truncf %18 : vector<256x128xf32> to vector<256x128xbf16>
    %c0_14 = arith.constant 0 : index
    %c0_15 = arith.constant 0 : index
    %c0_16 = arith.constant 0 : index
    %20 = vector.load %arg7[%c0_14, %c0_15, %c0_16] : memref<1x128x128xbf16, #tpu.memory_space<vmem>>, vector<1x128x128xbf16>
    %21 = vector.shape_cast %20 : vector<1x128x128xbf16> to vector<128x128xbf16>
    %cst_17 = arith.constant dense<0.000000e+00> : vector<256x128xf32>
    %22 = tpu.matmul %19, %21, %cst_17 {dimension_numbers = #tpu.dot_dimension_numbers<[1], [0], [0], [1], [0, 0, 1, 1], [], []>} : vector<256x128xbf16>, vector<128x128xbf16>, vector<256x128xf32> -> vector<256x128xf32>
    %c0_18 = arith.constant 0 : index
    %c0_19 = arith.constant 0 : index
    %c0_20 = arith.constant 0 : index
    %23 = vector.load %arg8[%c0_18, %c0_19, %c0_20] : memref<1x1x128xf32, #tpu.memory_space<vmem>>, vector<1x1x128xf32>
    %24 = vector.shape_cast %23 : vector<1x1x128xf32> to vector<1x128xf32>
    %25 = vector.broadcast %24 : vector<1x128xf32> to vector<256x128xf32>
    %26 = arith.addf %22, %25 : vector<256x128xf32>
    %c0_21 = arith.constant 0 : index
    %c0_22 = arith.constant 0 : index
    %c0_23 = arith.constant 0 : index
    %27 = vector.load %arg9[%c0_21, %c0_22, %c0_23] : memref<1x256x128xf32, #tpu.memory_space<vmem>>, vector<1x256x128xf32>
    %28 = vector.shape_cast %27 : vector<1x256x128xf32> to vector<256x128xf32>
    %29 = vector.shape_cast %26 : vector<256x128xf32> to vector<1x256x128xf32>
    tpu.vector_store %arg9[%c0_21, %c0_22, %c0_23], %29 {strides = array<i32>} : memref<1x256x128xf32, #tpu.memory_space<vmem>>, vector<1x256x128xf32>,
    return
  }
  func.func @transform_0(%arg0: i32, %arg1: i32) -> (i32, i32) {
    %c0_i32 = arith.constant 0 : i32
    %c0_i32_0 = arith.constant 0 : i32
    return %arg1, %c0_i32 : i32, i32
  }
  func.func @transform_1(%arg0: i32, %arg1: i32) -> (i32, i32, i32) {
    %c0_i32 = arith.constant 0 : i32
    %c0_i32_0 = arith.constant 0 : i32
    %c0_i32_1 = arith.constant 0 : i32
    return %arg0, %c0_i32, %c0_i32_0 : i32, i32, i32
  }
  func.func @transform_2(%arg0: i32, %arg1: i32) -> (i32, i32, i32) {
    %c0_i32 = arith.constant 0 : i32
    %c0_i32_0 = arith.constant 0 : i32
    %c0_i32_1 = arith.constant 0 : i32
    return %arg0, %c0_i32, %c0_i32_0 : i32, i32, i32
  }
  func.func @transform_3(%arg0: i32, %arg1: i32) -> (i32, i32, i32) {
    %c0_i32 = arith.constant 0 : i32
    %c0_i32_0 = arith.constant 0 : i32
    %c0_i32_1 = arith.constant 0 : i32
    return %arg0, %c0_i32, %c0_i32_0 : i32, i32, i32
  }
  func.func @transform_4(%arg0: i32, %arg1: i32) -> (i32, i32, i32) {
    %c0_i32 = arith.constant 0 : i32
    %c0_i32_0 = arith.constant 0 : i32
    %c0_i32_1 = arith.constant 0 : i32
    return %arg0, %c0_i32, %c0_i32_0 : i32, i32, i32
  }
  func.func @transform_5(%arg0: i32, %arg1: i32) -> (i32, i32, i32) {
    %c0_i32 = arith.constant 0 : i32
    %c0_i32_0 = arith.constant 0 : i32
    %c0_i32_1 = arith.constant 0 : i32
    return %arg0, %c0_i32, %c0_i32_0 : i32, i32, i32
  }
  func.func @transform_6(%arg0: i32, %arg1: i32) -> (i32, i32, i32) {
    %c0_i32 = arith.constant 0 : i32
    %c0_i32_0 = arith.constant 0 : i32
    %c0_i32_1 = arith.constant 0 : i32
    return %arg0, %c0_i32, %c0_i32_0 : i32, i32, i32
  }
  func.func @transform_7(%arg0: i32, %arg1: i32) -> (i32, i32, i32) {
    %c0_i32 = arith.constant 0 : i32
    %c0_i32_0 = arith.constant 0 : i32
    return %arg0, %arg1, %c0_i32 : i32, i32, i32
  }
}

</mosaic_0001>

<llo_original>
// kernel: tpu_custom_call.1
$region0: #{tpu_custom_call.1}
  #allocation0 [shape = 'u32[]', space=smem, size = 0x4, offset = 0x4, fixed_abs, tag = 'smem constant byte address 0x4 - core index']
  #allocation1 [shape = 'u32[72,128]{1,0:T(1,128)}', space=vmem, size = 0x9000, scoped, tag = 'internal scratch']
  %s0 = inlined_call_operand.vmem [shape: f32[256,16], index: 0, kind: input, shape index: {}]
  %s1 = inlined_call_operand.vmem [shape: bf16[2,16,128], index: 1, kind: input, shape index: {}]
  %s2 = inlined_call_operand.vmem [shape: f32[2,1,128], index: 2, kind: input, shape index: {}]
  %s3 = inlined_call_operand.vmem [shape: bf16[2,128,128], index: 3, kind: input, shape index: {}]
  %s4 = inlined_call_operand.vmem [shape: f32[2,1,128], index: 4, kind: input, shape index: {}]
  %s5 = inlined_call_operand.vmem [shape: bf16[2,128,128], index: 5, kind: input, shape index: {}]
  %s6 = inlined_call_operand.vmem [shape: f32[2,1,128], index: 6, kind: input, shape index: {}]
  %s7 = inlined_call_operand.hbm [shape: f32[2,256,128], index: 7, kind: output, shape index: {}]
  %s8 = sld [smem:[#allocation0]]
  $region61: #{tpu_custom_call.1} parent=0
    _
  %s10 = ssub.s32 1, %s8
  %s11 = scalar_select 0, %s10, %s8
  $region1: #{tpu_custom_call.1} parent=0
    #allocation2 [shape = 'u8[262144]{0}', space=vmem, size = 0x40000, scoped, tag = 'output window, operand 0']
    #allocation3 [shape = 's32[2]{0}', space=sflag, size = 0x8, scoped, tag = 'scoped memory for tpu_custom_call.1']
    %12 = vsyncpa [#allocation3], 0
    %s13 = scalar_lea.sflag [#allocation3], 1
    %14 = vsyncpa %s13, 0
    loop: start=0, step=1, limit=4
    $region2: #{tpu_custom_call.1} parent=1 // loop_pre_header
      _
    $region3: #{tpu_custom_call.1} parent=1 // loop_header
      %s16 = sphi 0, %s20
      %p17 = scmp.ge.s32.totalorder %s16, 4
      %s23 = sphi 0, %s35
      %s24 = sphi 0, %s31
      %s25 = sphi 0, %s23
      %s26 = sphi 0, %s24
      %s27 = sphi 0, %s25
      %s28 = sphi 0, %s26
      %s38 = sphi 0, %s40
      %s41 = sphi 0, %s38
      %s42 = sphi 0, %s41
      %s58 = sphi 0, %s42
      %s64 = sphi 0, %s66
      %s67 = sphi 0, %s64
      %s68 = sphi 0, %s67
      %s84 = sphi 0, %s68
      %s90 = sphi 0, %s92
      %s93 = sphi 0, %s90
      %s94 = sphi 0, %s93
      %s110 = sphi 0, %s94
      %s116 = sphi 0, %s118
      %s119 = sphi 0, %s116
      %s120 = sphi 0, %s119
      %s136 = sphi 0, %s120
      %s142 = sphi 0, %s144
      %s145 = sphi 0, %s142
      %s146 = sphi 0, %s145
      %s162 = sphi 0, %s146
      %s168 = sphi 0, %s170
      %s171 = sphi 0, %s168
      %s172 = sphi 0, %s171
      %s188 = sphi 0, %s172
      %s194 = sphi 0, %s196
      %s197 = sphi 0, %s194
      %s198 = sphi 0, %s197
      %s214 = sphi 0, %s198
      %s222 = sphi 0, %s224
      %s225 = sphi 0, %s222
      %s226 = sphi 0, %s225
      %s242 = sphi 0, %s226
    $region4: #{tpu_custom_call.1} parent=1 // loop_header_branch
      %19 = sbr.rel (%p17) target = $region8
    $region5: #{tpu_custom_call.1} parent=1 // loop_body
      %s21 = ssub.s32 %s16, 1
      %s22 = ssub.s32 %s16, 2
      %s29 = sadd.s32 1, %s24
      %p30 = scmp.ge.s32.totalorder %s29, 1
      %s31 = scalar_select %p30, 0, %s29
      %s32 = sadd.s32 1, %s23
      %s33 = scalar_select %p30, %s32, %s23
      %p34 = scmp.ge.s32.totalorder %s33, 2
      %s35 = scalar_select %p34, 0, %s33
      %s36 = ssub.s32 %s24, %s31
      %p37 = scmp.eq.s32.totalorder %s36, 0
      %s39 = sadd.s32 %s38, 1
      %s40 = scalar_select %p37, %s38, %s39
      %p43 = pneg %p37
      %p44 = scmp.eq.s32.totalorder %s16, 1
      %p45 = por %p43, %p44
      %p46 = scmp.ne.s32.totalorder %s38, %s41
      %p47 = scmp.eq.s32.totalorder %s16, 0
      %p48 = por %p46, %p47
      %p49 = scmp.ne.s32.totalorder %s38, %s41
      %p50 = scmp.eq.s32.totalorder %s21, 1
      %p51 = por %p49, %p50
      %p52 = scmp.ne.s32.totalorder %s41, %s42
      %p53 = scmp.eq.s32.totalorder %s21, 0
      %p54 = por %p52, %p53
      %p55 = scmp.ne.s32.totalorder %s41, %s42
      %p56 = scmp.eq.s32.totalorder %s22, 1
      %p57 = por %p55, %p56
      %p59 = scmp.ne.s32.totalorder %s42, %s58
      %p60 = scmp.eq.s32.totalorder %s22, 0
      %p61 = por %p59, %p60
      %s62 = ssub.s32 %s23, %s35
      %p63 = scmp.eq.s32.totalorder %s62, 0
      %s65 = sadd.s32 %s64, 1
      %s66 = scalar_select %p63, %s64, %s65
      %p69 = pneg %p63
      %p70 = scmp.eq.s32.totalorder %s16, 1
      %p71 = por %p69, %p70
      %p72 = scmp.ne.s32.totalorder %s64, %s67
      %p73 = scmp.eq.s32.totalorder %s16, 0
      %p74 = por %p72, %p73
      %p75 = scmp.ne.s32.totalorder %s64, %s67
      %p76 = scmp.eq.s32.totalorder %s21, 1
      %p77 = por %p75, %p76
      %p78 = scmp.ne.s32.totalorder %s67, %s68
      %p79 = scmp.eq.s32.totalorder %s21, 0
      %p80 = por %p78, %p79
      %p81 = scmp.ne.s32.totalorder %s67, %s68
      %p82 = scmp.eq.s32.totalorder %s22, 1
      %p83 = por %p81, %p82
      %p85 = scmp.ne.s32.totalorder %s68, %s84
      %p86 = scmp.eq.s32.totalorder %s22, 0
      %p87 = por %p85, %p86
      %s88 = ssub.s32 %s23, %s35
      %p89 = scmp.eq.s32.totalorder %s88, 0
      %s91 = sadd.s32 %s90, 1
      %s92 = scalar_select %p89, %s90, %s91
      %p95 = pneg %p89
      %p96 = scmp.eq.s32.totalorder %s16, 1
      %p97 = por %p95, %p96
      %p98 = scmp.ne.s32.totalorder %s90, %s93
      %p99 = scmp.eq.s32.totalorder %s16, 0
      %p100 = por %p98, %p99
      %p101 = scmp.ne.s32.totalorder %s90, %s93
      %p102 = scmp.eq.s32.totalorder %s21, 1
      %p103 = por %p101, %p102
      %p104 = scmp.ne.s32.totalorder %s93, %s94
      %p105 = scmp.eq.s32.totalorder %s21, 0
      %p106 = por %p104, %p105
      %p107 = scmp.ne.s32.totalorder %s93, %s94
      %p108 = scmp.eq.s32.totalorder %s22, 1
      %p109 = por %p107, %p108
      %p111 = scmp.ne.s32.totalorder %s94, %s110
      %p112 = scmp.eq.s32.totalorder %s22, 0
      %p113 = por %p111, %p112
      %s114 = ssub.s32 %s23, %s35
      %p115 = scmp.eq.s32.totalorder %s114, 0
      %s117 = sadd.s32 %s116, 1
      %s118 = scalar_select %p115, %s116, %s117
      %p121 = pneg %p115
      %p122 = scmp.eq.s32.totalorder %s16, 1
      %p123 = por %p121, %p122
      %p124 = scmp.ne.s32.totalorder %s116, %s119
      %p125 = scmp.eq.s32.totalorder %s16, 0
      %p126 = por %p124, %p125
      %p127 = scmp.ne.s32.totalorder %s116, %s119
      %p128 = scmp.eq.s32.totalorder %s21, 1
      %p129 = por %p127, %p128
      %p130 = scmp.ne.s32.totalorder %s119, %s120
      %p131 = scmp.eq.s32.totalorder %s21, 0
      %p132 = por %p130, %p131
      %p133 = scmp.ne.s32.totalorder %s119, %s120
      %p134 = scmp.eq.s32.totalorder %s22, 1
      %p135 = por %p133, %p134
      %p137 = scmp.ne.s32.totalorder %s120, %s136
      %p138 = scmp.eq.s32.totalorder %s22, 0
      %p139 = por %p137, %p138
      %s140 = ssub.s32 %s23, %s35
      %p141 = scmp.eq.s32.totalorder %s140, 0
      %s143 = sadd.s32 %s142, 1
      %s144 = scalar_select %p141, %s142, %s143
      %p147 = pneg %p141
      %p148 = scmp.eq.s32.totalorder %s16, 1
      %p149 = por %p147, %p148
      %p150 = scmp.ne.s32.totalorder %s142, %s145
      %p151 = scmp.eq.s32.totalorder %s16, 0
      %p152 = por %p150, %p151
      %p153 = scmp.ne.s32.totalorder %s142, %s145
      %p154 = scmp.eq.s32.totalorder %s21, 1
      %p155 = por %p153, %p154
      %p156 = scmp.ne.s32.totalorder %s145, %s146
      %p157 = scmp.eq.s32.totalorder %s21, 0
      %p158 = por %p156, %p157
      %p159 = scmp.ne.s32.totalorder %s145, %s146
      %p160 = scmp.eq.s32.totalorder %s22, 1
      %p161 = por %p159, %p160
      %p163 = scmp.ne.s32.totalorder %s146, %s162
      %p164 = scmp.eq.s32.totalorder %s22, 0
      %p165 = por %p163, %p164
      %s166 = ssub.s32 %s23, %s35
      %p167 = scmp.eq.s32.totalorder %s166, 0
      %s169 = sadd.s32 %s168, 1
      %s170 = scalar_select %p167, %s168, %s169
      %p173 = pneg %p167
      %p174 = scmp.eq.s32.totalorder %s16, 1
      %p175 = por %p173, %p174
      %p176 = scmp.ne.s32.totalorder %s168, %s171
      %p177 = scmp.eq.s32.totalorder %s16, 0
      %p178 = por %p176, %p177
      %p179 = scmp.ne.s32.totalorder %s168, %s171
      %p180 = scmp.eq.s32.totalorder %s21, 1
      %p181 = por %p179, %p180
      %p182 = scmp.ne.s32.totalorder %s171, %s172
      %p183 = scmp.eq.s32.totalorder %s21, 0
      %p184 = por %p182, %p183
      %p185 = scmp.ne.s32.totalorder %s171, %s172
      %p186 = scmp.eq.s32.totalorder %s22, 1
      %p187 = por %p185, %p186
      %p189 = scmp.ne.s32.totalorder %s172, %s188
      %p190 = scmp.eq.s32.totalorder %s22, 0
      %p191 = por %p189, %p190
      %s192 = ssub.s32 %s23, %s35
      %p193 = scmp.eq.s32.totalorder %s192, 0
      %s195 = sadd.s32 %s194, 1
      %s196 = scalar_select %p193, %s194, %s195
      %p199 = pneg %p193
      %p200 = scmp.eq.s32.totalorder %s16, 1
      %p201 = por %p199, %p200
      %p202 = scmp.ne.s32.totalorder %s194, %s197
      %p203 = scmp.eq.s32.totalorder %s16, 0
      %p204 = por %p202, %p203
      %p205 = scmp.ne.s32.totalorder %s194, %s197
      %p206 = scmp.eq.s32.totalorder %s21, 1
      %p207 = por %p205, %p206
      %p208 = scmp.ne.s32.totalorder %s197, %s198
      %p209 = scmp.eq.s32.totalorder %s21, 0
      %p210 = por %p208, %p209
      %p211 = scmp.ne.s32.totalorder %s197, %s198
      %p212 = scmp.eq.s32.totalorder %s22, 1
      %p213 = por %p211, %p212
      %p215 = scmp.ne.s32.totalorder %s198, %s214
      %p216 = scmp.eq.s32.totalorder %s22, 0
      %p217 = por %p215, %p216
      %s218 = ssub.s32 %s23, %s35
      %s219 = ssub.s32 %s24, %s31
      %s220 = sor.u32 %s218, %s219
      %p221 = scmp.eq.s32.totalorder %s220, 0
      %s223 = sadd.s32 %s222, 1
      %s224 = scalar_select %p221, %s222, %s223
      %p227 = pneg %p221
      %p228 = scmp.eq.s32.totalorder %s16, 1
      %p229 = por %p227, %p228
      %p230 = scmp.ne.s32.totalorder %s222, %s225
      %p231 = scmp.eq.s32.totalorder %s16, 0
      %p232 = por %p230, %p231
      %p233 = scmp.ne.s32.totalorder %s222, %s225
      %p234 = scmp.eq.s32.totalorder %s21, 1
      %p235 = por %p233, %p234
      %p236 = scmp.ne.s32.totalorder %s225, %s226
      %p237 = scmp.eq.s32.totalorder %s21, 0
      %p238 = por %p236, %p237
      %p239 = scmp.ne.s32.totalorder %s225, %s226
      %p240 = scmp.eq.s32.totalorder %s22, 1
      %p241 = por %p239, %p240
      %p243 = scmp.ne.s32.totalorder %s226, %s242
      %p244 = scmp.eq.s32.totalorder %s22, 0
      %p245 = por %p243, %p244
      %p246 = scmp.le.s32.totalorder 1, %s16
      %p247 = scmp.lt.s32.totalorder %s16, 3
      %p248 = pnand %p246, %p247
      %p249 = pneg %p248
      // Predicated region
      $region9: #{tpu_custom_call.1} parent=5 // pred_check
        _
      $region10: #{tpu_custom_call.1} parent=5 // pred_check_branch
        %251 = sbr.rel (%p248) target = $region12
      $region11: #{tpu_custom_call.1} parent=5 // pred_region
        %s252 = ssub.s32 %s16, 1
        // Predicated region
        $region13: #{tpu_custom_call.1} parent=11 // pred_check
          %p253 = pneg %p54
        $region14: #{tpu_custom_call.1} parent=11 // pred_check_branch
          %255 = sbr.rel (%p253) target = $region16
        $region15: #{tpu_custom_call.1} parent=11 // pred_region
          %s256 = smul.u32 32, %s26
          %p257 = scmp.lt.s32.totalorder %s256, 31
          %s258 = scalar_select %p257, %s256, 31
          %s259 = smul.addr %s258, 8
          %s260 = scalar_lea.vmem %s0, %s259
          %s261 = smul.u32 32, %s26
        $region16: #{tpu_custom_call.1} parent=11 // pred_fallthru
          _
      $region12: #{tpu_custom_call.1} parent=5 // pred_fallthru
        _
      %p262 = scmp.lt.s32.totalorder %s16, 2
      // Predicated region
      $region17: #{tpu_custom_call.1} parent=5 // pred_check
        %p263 = pneg %p262
      $region18: #{tpu_custom_call.1} parent=5 // pred_check_branch
        %265 = sbr.rel (%p263) target = $region20
      $region19: #{tpu_custom_call.1} parent=5 // pred_region
        // Predicated region
        $region21: #{tpu_custom_call.1} parent=19 // pred_check
          %p266 = pneg %p74
        $region22: #{tpu_custom_call.1} parent=19 // pred_check_branch
          %268 = sbr.rel (%p266) target = $region24
        $region23: #{tpu_custom_call.1} parent=19 // pred_region
          %p269 = scmp.lt.s32.totalorder %s23, 1
          %s270 = scalar_select %p269, %s23, 1
          %s271 = smul.addr %s270, 2
          %s272 = smul.addr %s271, 4
          %s273 = scalar_lea.vmem %s1, %s272
        $region24: #{tpu_custom_call.1} parent=19 // pred_fallthru
          _
        // Predicated region
        $region25: #{tpu_custom_call.1} parent=19 // pred_check
          %p274 = pneg %p100
        $region26: #{tpu_custom_call.1} parent=19 // pred_check_branch
          %276 = sbr.rel (%p274) target = $region28
        $region27: #{tpu_custom_call.1} parent=19 // pred_region
          %p277 = scmp.lt.s32.totalorder %s23, 1
          %s278 = scalar_select %p277, %s23, 1
          %s279 = scalar_lea.vmem %s2, %s278
        $region28: #{tpu_custom_call.1} parent=19 // pred_fallthru
          _
        // Predicated region
        $region29: #{tpu_custom_call.1} parent=19 // pred_check
          %p280 = pneg %p126
        $region30: #{tpu_custom_call.1} parent=19 // pred_check_branch
          %282 = sbr.rel (%p280) target = $region32
        $region31: #{tpu_custom_call.1} parent=19 // pred_region
          %p283 = scmp.lt.s32.totalorder %s23, 1
          %s284 = scalar_select %p283, %s23, 1
          %s285 = smul.addr %s284, 16
          %s286 = smul.addr %s285, 4
          %s287 = scalar_lea.vmem %s3, %s286
        $region32: #{tpu_custom_call.1} parent=19 // pred_fallthru
          _
        // Predicated region
        $region33: #{tpu_custom_call.1} parent=19 // pred_check
          %p288 = pneg %p152
        $region34: #{tpu_custom_call.1} parent=19 // pred_check_branch
          %290 = sbr.rel (%p288) target = $region36
        $region35: #{tpu_custom_call.1} parent=19 // pred_region
          %p291 = scmp.lt.s32.totalorder %s23, 1
          %s292 = scalar_select %p291, %s23, 1
          %s293 = scalar_lea.vmem %s4, %s292
        $region36: #{tpu_custom_call.1} parent=19 // pred_fallthru
          _
        // Predicated region
        $region37: #{tpu_custom_call.1} parent=19 // pred_check
          %p294 = pneg %p178
        $region38: #{tpu_custom_call.1} parent=19 // pred_check_branch
          %296 = sbr.rel (%p294) target = $region40
        $region39: #{tpu_custom_call.1} parent=19 // pred_region
          %p297 = scmp.lt.s32.totalorder %s23, 1
          %s298 = scalar_select %p297, %s23, 1
          %s299 = smul.addr %s298, 16
          %s300 = smul.addr %s299, 4
          %s301 = scalar_lea.vmem %s5, %s300
        $region40: #{tpu_custom_call.1} parent=19 // pred_fallthru
          _
        // Predicated region
        $region41: #{tpu_custom_call.1} parent=19 // pred_check
          %p302 = pneg %p204
        $region42: #{tpu_custom_call.1} parent=19 // pred_check_branch
          %304 = sbr.rel (%p302) target = $region44
        $region43: #{tpu_custom_call.1} parent=19 // pred_region
          %p305 = scmp.lt.s32.totalorder %s23, 1
          %s306 = scalar_select %p305, %s23, 1
          %s307 = scalar_lea.vmem %s6, %s306
        $region44: #{tpu_custom_call.1} parent=19 // pred_fallthru
          _
      $region20: #{tpu_custom_call.1} parent=5 // pred_fallthru
        _
      %p308 = scmp.le.s32.totalorder 1, %s16
      %p309 = scmp.lt.s32.totalorder %s16, 3
      %p310 = pnand %p308, %p309
      %p311 = pneg %p310
      // Predicated region
      $region45: #{tpu_custom_call.1} parent=5 // pred_check
        _
      $region46: #{tpu_custom_call.1} parent=5 // pred_check_branch
        %313 = sbr.rel (%p310) target = $region48
      $region47: #{tpu_custom_call.1} parent=5 // pred_region
        %s314 = ssub.s32 %s16, 1
        %s315 = smul.u32 32, %s26
        %p316 = scmp.lt.s32.totalorder %s315, 31
        %s317 = scalar_select %p316, %s315, 31
        %s318 = smul.addr %s317, 8
        %s319 = scalar_lea.vmem %s0, %s318
        %p320 = pneg %p54
        %p321 = pneg %p51
        %p322 = scmp.lt.s32.totalorder %s25, 1
        %s323 = scalar_select %p322, %s25, 1
        %s324 = smul.addr %s323, 2
        %s325 = smul.addr %s324, 4
        %s326 = scalar_lea.vmem %s1, %s325
        %p327 = pneg %p80
        %p328 = pneg %p77
        %p329 = scmp.lt.s32.totalorder %s25, 1
        %s330 = scalar_select %p329, %s25, 1
        %s331 = scalar_lea.vmem %s2, %s330
        %p332 = pneg %p106
        %p333 = pneg %p103
        %p334 = scmp.lt.s32.totalorder %s25, 1
        %s335 = scalar_select %p334, %s25, 1
        %s336 = smul.addr %s335, 16
        %s337 = smul.addr %s336, 4
        %s338 = scalar_lea.vmem %s3, %s337
        %p339 = pneg %p132
        %p340 = pneg %p129
        %p341 = scmp.lt.s32.totalorder %s25, 1
        %s342 = scalar_select %p341, %s25, 1
        %s343 = scalar_lea.vmem %s4, %s342
        %p344 = pneg %p158
        %p345 = pneg %p155
        %p346 = scmp.lt.s32.totalorder %s25, 1
        %s347 = scalar_select %p346, %s25, 1
        %s348 = smul.addr %s347, 16
        %s349 = smul.addr %s348, 4
        %s350 = scalar_lea.vmem %s5, %s349
        %p351 = pneg %p184
        %p352 = pneg %p181
        %p353 = scmp.lt.s32.totalorder %s25, 1
        %s354 = scalar_select %p353, %s25, 1
        %s355 = scalar_lea.vmem %s6, %s354
        %p356 = pneg %p210
        %p357 = pneg %p207
        %p358 = pneg %p238
        %p359 = pneg %p235
        %s360 = sand.u32 %s225, 1
        %s361 = scalar_lea.sflag [#allocation3], %s360
        %s362 = sand.u32 %s225, 1
        %s363 = smul.addr %s362, 256
        %s364 = scalar_lea.vmem [#allocation2], %s363
        %s365 = smul.u32 32, %s26
        %p366 = scmp.lt.s32.totalorder %s365, 31
        %s367 = scalar_select %p366, %s365, 31
        %s368 = smul.addr %s367, 8
        %s369 = scalar_lea.vmem %s0, %s368
        %s370 = smul.u32 32, %s26
        %p371 = scmp.lt.s32.totalorder %s25, 1
        %s372 = scalar_select %p371, %s25, 1
        %s373 = smul.addr %s372, 2
        %s374 = smul.addr %s373, 4
        %s375 = scalar_lea.vmem %s1, %s374
        %p376 = scmp.lt.s32.totalorder %s25, 1
        %s377 = scalar_select %p376, %s25, 1
        %s378 = scalar_lea.vmem %s2, %s377
        %p379 = scmp.lt.s32.totalorder %s25, 1
        %s380 = scalar_select %p379, %s25, 1
        %s381 = smul.addr %s380, 16
        %s382 = smul.addr %s381, 4
        %s383 = scalar_lea.vmem %s3, %s382
        %p384 = scmp.lt.s32.totalorder %s25, 1
        %s385 = scalar_select %p384, %s25, 1
        %s386 = scalar_lea.vmem %s4, %s385
        %p387 = scmp.lt.s32.totalorder %s25, 1
        %s388 = scalar_select %p387, %s25, 1
        %s389 = smul.addr %s388, 16
        %s390 = smul.addr %s389, 4
        %s391 = scalar_lea.vmem %s5, %s390
        %p392 = scmp.lt.s32.totalorder %s25, 1
        %s393 = scalar_select %p392, %s25, 1
        %s394 = scalar_lea.vmem %s6, %s393
        %s395 = smul.u32 32, %s26
        %v397 = vld [vmem:[%s369] sm:$0xff]
        %v398 = vld [vmem:[%s369 + $0x8] sm:$0xff]
        %v399 = vld [vmem:[%s369 + $0x10] sm:$0xff]
        %v400 = vld [vmem:[%s369 + $0x18] sm:$0xff]
        %v401 = vld [vmem:[%s369 + $0x20] sm:$0xff]
        %v402 = vld [vmem:[%s369 + $0x28] sm:$0xff]
        %v403 = vld [vmem:[%s369 + $0x30] sm:$0xff]
        %v404 = vld [vmem:[%s369 + $0x38] sm:$0xff]
        %v405 = vld [vmem:[%s369 + $0x40] sm:$0xff]
        %v406 = vld [vmem:[%s369 + $0x48] sm:$0xff]
        %v407 = vld [vmem:[%s369 + $0x50] sm:$0xff]
        %v408 = vld [vmem:[%s369 + $0x58] sm:$0xff]
        %v409 = vld [vmem:[%s369 + $0x60] sm:$0xff]
        %v410 = vld [vmem:[%s369 + $0x68] sm:$0xff]
        %v411 = vld [vmem:[%s369 + $0x70] sm:$0xff]
        %v412 = vld [vmem:[%s369 + $0x78] sm:$0xff]
        %v413 = vld [vmem:[%s369 + $0x80] sm:$0xff]
        %v414 = vld [vmem:[%s369 + $0x88] sm:$0xff]
        %v415 = vld [vmem:[%s369 + $0x90] sm:$0xff]
        %v416 = vld [vmem:[%s369 + $0x98] sm:$0xff]
        %v417 = vld [vmem:[%s369 + $0xa0] sm:$0xff]
        %v418 = vld [vmem:[%s369 + $0xa8] sm:$0xff]
        %v419 = vld [vmem:[%s369 + $0xb0] sm:$0xff]
        %v420 = vld [vmem:[%s369 + $0xb8] sm:$0xff]
        %v421 = vld [vmem:[%s369 + $0xc0] sm:$0xff]
        %v422 = vld [vmem:[%s369 + $0xc8] sm:$0xff]
        %v423 = vld [vmem:[%s369 + $0xd0] sm:$0xff]
        %v424 = vld [vmem:[%s369 + $0xd8] sm:$0xff]
        %v425 = vld [vmem:[%s369 + $0xe0] sm:$0xff]
        %v426 = vld [vmem:[%s369 + $0xe8] sm:$0xff]
        %v427 = vld [vmem:[%s369 + $0xf0] sm:$0xff]
        %v428 = vld [vmem:[%s369 + $0xf8] sm:$0xff]
        %v429 = vpack.c.bf16 %v398, %v397
        %v430 = vpack.c.bf16 %v400, %v399
        %v431 = vpack.c.bf16 %v402, %v401
        %v432 = vpack.c.bf16 %v404, %v403
        %v433 = vpack.c.bf16 %v406, %v405
        %v434 = vpack.c.bf16 %v408, %v407
        %v435 = vpack.c.bf16 %v410, %v409
        %v436 = vpack.c.bf16 %v412, %v411
        %v437 = vpack.c.bf16 %v414, %v413
        %v438 = vpack.c.bf16 %v416, %v415
        %v439 = vpack.c.bf16 %v418, %v417
        %v440 = vpack.c.bf16 %v420, %v419
        %v441 = vpack.c.bf16 %v422, %v421
        %v442 = vpack.c.bf16 %v424, %v423
        %v443 = vpack.c.bf16 %v426, %v425
        %v444 = vpack.c.bf16 %v428, %v427
        %v445 = vld [vmem:[%s375] sm:$0xf]
        %v446 = vld [vmem:[%s375 + $0x4] sm:$0xf]
        %v447 = vld [vmem:[%s378] sm:$0x1]
        %v449 = vperm.slane %v447, 0
        %v453 = vunpack.c.l.b16 %v445
        %v454 = vunpack.c.l.b16 %v446
        %v455 = vpack.c.b16 %v454, %v453
        %vm457 = vcmask 130048
        %v459 = vsel %vm457, %v429, 0
        %v462 = vsel %vm457, %v430, 0
        %v465 = vsel %vm457, %v431, 0
        %v468 = vsel %vm457, %v432, 0
        %v471 = vsel %vm457, %v433, 0
        %v474 = vsel %vm457, %v434, 0
        %v477 = vsel %vm457, %v435, 0
        %v480 = vsel %vm457, %v436, 0
        %v483 = vsel %vm457, %v437, 0
        %v486 = vsel %vm457, %v438, 0
        %v489 = vsel %vm457, %v439, 0
        %v492 = vsel %vm457, %v440, 0
        %v495 = vsel %vm457, %v441, 0
        %v498 = vsel %vm457, %v442, 0
        %v501 = vsel %vm457, %v443, 0
        %v504 = vsel %vm457, %v444, 0
        %506 = vmatpush.bf16.msra.mxu0 0
        %507 = vmatpush.bf16.msra.mxu0 0
        %508 = vmatpush.bf16.msra.mxu0 0
        %509 = vmatpush.bf16.msra.mxu0 0
        %510 = vmatpush.bf16.msra.mxu0 0
        %511 = vmatpush.bf16.msra.mxu0 0
        %512 = vmatpush.bf16.msra.mxu0 0
        %513 = vmatpush.bf16.msra.mxu0 %v455
        %514 = vmatmul.bf16.gmra.mxu0 %v459
        %v515 = vpop.f32.mrf.mxu0
        %v516 = vadd.f32 %v449, %v515
        %v517 = vpop.f32.mrf.mxu0
        %v518 = vadd.f32 %v449, %v517
        %519 = vmatmul.bf16.gmra.mxu0 %v462
        %v520 = vpop.f32.mrf.mxu0
        %v521 = vadd.f32 %v449, %v520
        %v522 = vpop.f32.mrf.mxu0
        %v523 = vadd.f32 %v449, %v522
        %524 = vmatmul.bf16.gmra.mxu0 %v465
        %v525 = vpop.f32.mrf.mxu0
        %v526 = vadd.f32 %v449, %v525
        %v527 = vpop.f32.mrf.mxu0
        %v528 = vadd.f32 %v449, %v527
        %529 = vmatmul.bf16.gmra.mxu0 %v468
        %v530 = vpop.f32.mrf.mxu0
        %v531 = vadd.f32 %v449, %v530
        %v532 = vpop.f32.mrf.mxu0
        %v533 = vadd.f32 %v449, %v532
        %534 = vmatmul.bf16.gmra.mxu0 %v471
        %v535 = vpop.f32.mrf.mxu0
        %v536 = vadd.f32 %v449, %v535
        %v537 = vpop.f32.mrf.mxu0
        %v538 = vadd.f32 %v449, %v537
        %539 = vmatmul.bf16.gmra.mxu0 %v474
        %v540 = vpop.f32.mrf.mxu0
        %v541 = vadd.f32 %v449, %v540
        %v542 = vpop.f32.mrf.mxu0
        %v543 = vadd.f32 %v449, %v542
        %544 = vmatmul.bf16.gmra.mxu0 %v477
        %v545 = vpop.f32.mrf.mxu0
        %v546 = vadd.f32 %v449, %v545
        %v547 = vpop.f32.mrf.mxu0
        %v548 = vadd.f32 %v449, %v547
        %549 = vmatmul.bf16.gmra.mxu0 %v480
        %v550 = vpop.f32.mrf.mxu0
        %v551 = vadd.f32 %v449, %v550
        %v552 = vpop.f32.mrf.mxu0
        %v553 = vadd.f32 %v449, %v552
        %554 = vmatmul.bf16.gmra.mxu0 %v483
        %v555 = vpop.f32.mrf.mxu0
        %v556 = vadd.f32 %v449, %v555
        %v557 = vpop.f32.mrf.mxu0
        %v558 = vadd.f32 %v449, %v557
        %559 = vmatmul.bf16.gmra.mxu0 %v486
        %v560 = vpop.f32.mrf.mxu0
        %v561 = vadd.f32 %v449, %v560
        %v562 = vpop.f32.mrf.mxu0
        %v563 = vadd.f32 %v449, %v562
        %564 = vmatmul.bf16.gmra.mxu0 %v489
        %v565 = vpop.f32.mrf.mxu0
        %v566 = vadd.f32 %v449, %v565
        %v567 = vpop.f32.mrf.mxu0
        %v568 = vadd.f32 %v449, %v567
        %569 = vmatmul.bf16.gmra.mxu0 %v492
        %v570 = vpop.f32.mrf.mxu0
        %v571 = vadd.f32 %v449, %v570
        %v572 = vpop.f32.mrf.mxu0
        %v573 = vadd.f32 %v449, %v572
        %574 = vmatmul.bf16.gmra.mxu0 %v495
        %v575 = vpop.f32.mrf.mxu0
        %v576 = vadd.f32 %v449, %v575
        %v577 = vpop.f32.mrf.mxu0
        %v578 = vadd.f32 %v449, %v577
        %579 = vmatmul.bf16.gmra.mxu0 %v498
        %v580 = vpop.f32.mrf.mxu0
        %v581 = vadd.f32 %v449, %v580
        %v582 = vpop.f32.mrf.mxu0
        %v583 = vadd.f32 %v449, %v582
        %584 = vmatmul.bf16.gmra.mxu0 %v501
        %v585 = vpop.f32.mrf.mxu0
        %v586 = vadd.f32 %v449, %v585
        %v587 = vpop.f32.mrf.mxu0
        %v588 = vadd.f32 %v449, %v587
        %589 = vmatmul.bf16.gmra.mxu0 %v504
        %v590 = vpop.f32.mrf.mxu0
        %v591 = vadd.f32 %v449, %v590
        %v592 = vpop.f32.mrf.mxu0
        %v593 = vadd.f32 %v449, %v592
        %594 = vdwg.mxu0
        %v595 = vtanh.pop %v516
        %v596 = vtanh.pop %v518
        %v597 = vtanh.pop %v521
        %v598 = vtanh.pop %v523
        %v599 = vtanh.pop %v526
        %v600 = vtanh.pop %v528
        %v601 = vtanh.pop %v531
        %v602 = vtanh.pop %v533
        %v603 = vtanh.pop %v536
        %v604 = vtanh.pop %v538
        %v605 = vtanh.pop %v541
        %v606 = vtanh.pop %v543
        %v607 = vtanh.pop %v546
        %v608 = vtanh.pop %v548
        %v609 = vtanh.pop %v551
        %v610 = vtanh.pop %v553
        %v611 = vtanh.pop %v556
        %v612 = vtanh.pop %v558
        %v613 = vtanh.pop %v561
        %v614 = vtanh.pop %v563
        %v615 = vtanh.pop %v566
        %v616 = vtanh.pop %v568
        %v617 = vtanh.pop %v571
        %v618 = vtanh.pop %v573
        %v619 = vtanh.pop %v576
        %v620 = vtanh.pop %v578
        %v621 = vtanh.pop %v581
        %v622 = vtanh.pop %v583
        %v623 = vtanh.pop %v586
        %v624 = vtanh.pop %v588
        %v625 = vtanh.pop %v591
        %v626 = vtanh.pop %v593
        %v627 = vpack.c.bf16 %v596, %v595
        %v628 = vpack.c.bf16 %v598, %v597
        %v629 = vpack.c.bf16 %v600, %v599
        %v630 = vpack.c.bf16 %v602, %v601
        %v631 = vpack.c.bf16 %v604, %v603
        %v632 = vpack.c.bf16 %v606, %v605
        %v633 = vpack.c.bf16 %v608, %v607
        %v634 = vpack.c.bf16 %v610, %v609
        %v635 = vpack.c.bf16 %v612, %v611
        %v636 = vpack.c.bf16 %v614, %v613
        %v637 = vpack.c.bf16 %v616, %v615
        %v638 = vpack.c.bf16 %v618, %v617
        %v639 = vpack.c.bf16 %v620, %v619
        %v640 = vpack.c.bf16 %v622, %v621
        %v641 = vpack.c.bf16 %v624, %v623
        %v642 = vpack.c.bf16 %v626, %v625
        %v643 = vld [vmem:[%s383] sm:$0xf]
        %v644 = vld [vmem:[%s383 + $0x4] sm:$0xf]
        %v645 = vld [vmem:[%s383 + $0x8] sm:$0xf]
        %v646 = vld [vmem:[%s383 + $0xc] sm:$0xf]
        %v647 = vld [vmem:[%s383 + $0x10] sm:$0xf]
        %v648 = vld [vmem:[%s383 + $0x14] sm:$0xf]
        %v649 = vld [vmem:[%s383 + $0x18] sm:$0xf]
        %v650 = vld [vmem:[%s383 + $0x1c] sm:$0xf]
        %v651 = vld [vmem:[%s383 + $0x20] sm:$0xf]
        %v652 = vld [vmem:[%s383 + $0x24] sm:$0xf]
        %v653 = vld [vmem:[%s383 + $0x28] sm:$0xf]
        %v654 = vld [vmem:[%s383 + $0x2c] sm:$0xf]
        %v655 = vld [vmem:[%s383 + $0x30] sm:$0xf]
        %v656 = vld [vmem:[%s383 + $0x34] sm:$0xf]
        %v657 = vld [vmem:[%s383 + $0x38] sm:$0xf]
        %v658 = vld [vmem:[%s383 + $0x3c] sm:$0xf]
        %v659 = vld [vmem:[%s386] sm:$0x1]
        %v661 = vperm.slane %v659, 0
        %v679 = vunpack.c.l.b16 %v643
        %v680 = vunpack.c.l.b16 %v644
        %v681 = vunpack.c.l.b16 %v645
        %v682 = vunpack.c.l.b16 %v646
        %v683 = vunpack.c.l.b16 %v647
        %v684 = vunpack.c.l.b16 %v648
        %v685 = vunpack.c.l.b16 %v649
        %v686 = vunpack.c.l.b16 %v650
        %v687 = vunpack.c.l.b16 %v651
        %v688 = vunpack.c.l.b16 %v652
        %v689 = vunpack.c.l.b16 %v653
        %v690 = vunpack.c.l.b16 %v654
        %v691 = vunpack.c.l.b16 %v655
        %v692 = vunpack.c.l.b16 %v656
        %v693 = vunpack.c.l.b16 %v657
        %v694 = vunpack.c.l.b16 %v658
        %v695 = vpack.c.b16 %v680, %v679
        %v696 = vpack.c.b16 %v682, %v681
        %v697 = vpack.c.b16 %v684, %v683
        %v698 = vpack.c.b16 %v686, %v685
        %v699 = vpack.c.b16 %v688, %v687
        %v700 = vpack.c.b16 %v690, %v689
        %v701 = vpack.c.b16 %v692, %v691
        %v702 = vpack.c.b16 %v694, %v693
        %711 = vmatpush.bf16.msra.mxu0 %v702
        %712 = vmatpush.bf16.msra.mxu0 %v701
        %713 = vmatpush.bf16.msra.mxu0 %v700
        %714 = vmatpush.bf16.msra.mxu0 %v699
        %715 = vmatpush.bf16.msra.mxu0 %v698
        %716 = vmatpush.bf16.msra.mxu0 %v697
        %717 = vmatpush.bf16.msra.mxu0 %v696
        %718 = vmatpush.bf16.msra.mxu0 %v695
        %719 = vmatmul.bf16.gmra.mxu0 %v627
        %v720 = vpop.f32.mrf.mxu0
        %v721 = vadd.f32 %v661, %v720
        %v722 = vpop.f32.mrf.mxu0
        %v723 = vadd.f32 %v661, %v722
        %724 = vmatmul.bf16.gmra.mxu0 %v628
        %v725 = vpop.f32.mrf.mxu0
        %v726 = vadd.f32 %v661, %v725
        %v727 = vpop.f32.mrf.mxu0
        %v728 = vadd.f32 %v661, %v727
        %729 = vmatmul.bf16.gmra.mxu0 %v629
        %v730 = vpop.f32.mrf.mxu0
        %v731 = vadd.f32 %v661, %v730
        %v732 = vpop.f32.mrf.mxu0
        %v733 = vadd.f32 %v661, %v732
        %734 = vmatmul.bf16.gmra.mxu0 %v630
        %v735 = vpop.f32.mrf.mxu0
        %v736 = vadd.f32 %v661, %v735
        %v737 = vpop.f32.mrf.mxu0
        %v738 = vadd.f32 %v661, %v737
        %739 = vmatmul.bf16.gmra.mxu0 %v631
        %v740 = vpop.f32.mrf.mxu0
        %v741 = vadd.f32 %v661, %v740
        %v742 = vpop.f32.mrf.mxu0
        %v743 = vadd.f32 %v661, %v742
        %744 = vmatmul.bf16.gmra.mxu0 %v632
        %v745 = vpop.f32.mrf.mxu0
        %v746 = vadd.f32 %v661, %v745
        %v747 = vpop.f32.mrf.mxu0
        %v748 = vadd.f32 %v661, %v747
        %749 = vmatmul.bf16.gmra.mxu0 %v633
        %v750 = vpop.f32.mrf.mxu0
        %v751 = vadd.f32 %v661, %v750
        %v752 = vpop.f32.mrf.mxu0
        %v753 = vadd.f32 %v661, %v752
        %754 = vmatmul.bf16.gmra.mxu0 %v634
        %v755 = vpop.f32.mrf.mxu0
        %v756 = vadd.f32 %v661, %v755
        %v757 = vpop.f32.mrf.mxu0
        %v758 = vadd.f32 %v661, %v757
        %759 = vmatmul.bf16.gmra.mxu0 %v635
        %v760 = vpop.f32.mrf.mxu0
        %v761 = vadd.f32 %v661, %v760
        %v762 = vpop.f32.mrf.mxu0
        %v763 = vadd.f32 %v661, %v762
        %764 = vmatmul.bf16.gmra.mxu0 %v636
        %v765 = vpop.f32.mrf.mxu0
        %v766 = vadd.f32 %v661, %v765
        %v767 = vpop.f32.mrf.mxu0
        %v768 = vadd.f32 %v661, %v767
        %769 = vmatmul.bf16.gmra.mxu0 %v637
        %v770 = vpop.f32.mrf.mxu0
        %v771 = vadd.f32 %v661, %v770
        %v772 = vpop.f32.mrf.mxu0
        %v773 = vadd.f32 %v661, %v772
        %774 = vmatmul.bf16.gmra.mxu0 %v638
        %v775 = vpop.f32.mrf.mxu0
        %v776 = vadd.f32 %v661, %v775
        %v777 = vpop.f32.mrf.mxu0
        %v778 = vadd.f32 %v661, %v777
        %779 = vmatmul.bf16.gmra.mxu0 %v639
        %v780 = vpop.f32.mrf.mxu0
        %v781 = vadd.f32 %v661, %v780
        %v782 = vpop.f32.mrf.mxu0
        %v783 = vadd.f32 %v661, %v782
        %784 = vmatmul.bf16.gmra.mxu0 %v640
        %v785 = vpop.f32.mrf.mxu0
        %v786 = vadd.f32 %v661, %v785
        %v787 = vpop.f32.mrf.mxu0
        %v788 = vadd.f32 %v661, %v787
        %789 = vmatmul.bf16.gmra.mxu0 %v641
        %v790 = vpop.f32.mrf.mxu0
        %v791 = vadd.f32 %v661, %v790
        %v792 = vpop.f32.mrf.mxu0
        %v793 = vadd.f32 %v661, %v792
        %794 = vmatmul.bf16.gmra.mxu0 %v642
        %v795 = vpop.f32.mrf.mxu0
        %v796 = vadd.f32 %v661, %v795
        %v797 = vpop.f32.mrf.mxu0
        %v798 = vadd.f32 %v661, %v797
        %799 = vdwg.mxu0
        %v800 = vtanh.pop %v721
        %v801 = vtanh.pop %v723
        %v802 = vtanh.pop %v726
        %v803 = vtanh.pop %v728
        %v804 = vtanh.pop %v731
        %v805 = vtanh.pop %v733
        %v806 = vtanh.pop %v736
        %v807 = vtanh.pop %v738
        %v808 = vtanh.pop %v741
        %v809 = vtanh.pop %v743
        %v810 = vtanh.pop %v746
        %v811 = vtanh.pop %v748
        %v812 = vtanh.pop %v751
        %v813 = vtanh.pop %v753
        %v814 = vtanh.pop %v756
        %v815 = vtanh.pop %v758
        %v816 = vtanh.pop %v761
        %v817 = vtanh.pop %v763
        %v818 = vtanh.pop %v766
        %v819 = vtanh.pop %v768
        %v820 = vtanh.pop %v771
        %v821 = vtanh.pop %v773
        %v822 = vtanh.pop %v776
        %v823 = vtanh.pop %v778
        %v824 = vtanh.pop %v781
        %v825 = vtanh.pop %v783
        %v826 = vtanh.pop %v786
        %v827 = vtanh.pop %v788
        %v828 = vtanh.pop %v791
        %v829 = vtanh.pop %v793
        %v830 = vtanh.pop %v796
        %v831 = vtanh.pop %v798
        %v832 = vpack.c.bf16 %v801, %v800
        %v833 = vpack.c.bf16 %v803, %v802
        %v834 = vpack.c.bf16 %v805, %v804
        %v835 = vpack.c.bf16 %v807, %v806
        %v836 = vpack.c.bf16 %v809, %v808
        %v837 = vpack.c.bf16 %v811, %v810
        %v838 = vpack.c.bf16 %v813, %v812
        %v839 = vpack.c.bf16 %v815, %v814
        %v840 = vpack.c.bf16 %v817, %v816
        %v841 = vpack.c.bf16 %v819, %v818
        %v842 = vpack.c.bf16 %v821, %v820
        %v843 = vpack.c.bf16 %v823, %v822
        %v844 = vpack.c.bf16 %v825, %v824
        %v845 = vpack.c.bf16 %v827, %v826
        %v846 = vpack.c.bf16 %v829, %v828
        %v847 = vpack.c.bf16 %v831, %v830
        %v848 = vld [vmem:[%s391] sm:$0xf]
        %v849 = vld [vmem:[%s391 + $0x4] sm:$0xf]
        %v850 = vld [vmem:[%s391 + $0x8] sm:$0xf]
        %v851 = vld [vmem:[%s391 + $0xc] sm:$0xf]
        %v852 = vld [vmem:[%s391 + $0x10] sm:$0xf]
        %v853 = vld [vmem:[%s391 + $0x14] sm:$0xf]
        %v854 = vld [vmem:[%s391 + $0x18] sm:$0xf]
        %v855 = vld [vmem:[%s391 + $0x1c] sm:$0xf]
        %v856 = vld [vmem:[%s391 + $0x20] sm:$0xf]
        %v857 = vld [vmem:[%s391 + $0x24] sm:$0xf]
        %v858 = vld [vmem:[%s391 + $0x28] sm:$0xf]
        %v859 = vld [vmem:[%s391 + $0x2c] sm:$0xf]
        %v860 = vld [vmem:[%s391 + $0x30] sm:$0xf]
        %v861 = vld [vmem:[%s391 + $0x34] sm:$0xf]
        %v862 = vld [vmem:[%s391 + $0x38] sm:$0xf]
        %v863 = vld [vmem:[%s391 + $0x3c] sm:$0xf]
        %v864 = vld [vmem:[%s394] sm:$0x1]
        %v866 = vperm.slane %v864, 0
        %v884 = vunpack.c.l.b16 %v848
        %v885 = vunpack.c.l.b16 %v849
        %v886 = vunpack.c.l.b16 %v850
        %v887 = vunpack.c.l.b16 %v851
        %v888 = vunpack.c.l.b16 %v852
        %v889 = vunpack.c.l.b16 %v853
        %v890 = vunpack.c.l.b16 %v854
        %v891 = vunpack.c.l.b16 %v855
        %v892 = vunpack.c.l.b16 %v856
        %v893 = vunpack.c.l.b16 %v857
        %v894 = vunpack.c.l.b16 %v858
        %v895 = vunpack.c.l.b16 %v859
        %v896 = vunpack.c.l.b16 %v860
        %v897 = vunpack.c.l.b16 %v861
        %v898 = vunpack.c.l.b16 %v862
        %v899 = vunpack.c.l.b16 %v863
        %v900 = vpack.c.b16 %v885, %v884
        %v901 = vpack.c.b16 %v887, %v886
        %v902 = vpack.c.b16 %v889, %v888
        %v903 = vpack.c.b16 %v891, %v890
        %v904 = vpack.c.b16 %v893, %v892
        %v905 = vpack.c.b16 %v895, %v894
        %v906 = vpack.c.b16 %v897, %v896
        %v907 = vpack.c.b16 %v899, %v898
        %916 = vmatpush.bf16.msra.mxu0 %v907
        %917 = vmatpush.bf16.msra.mxu0 %v906
        %918 = vmatpush.bf16.msra.mxu0 %v905
        %919 = vmatpush.bf16.msra.mxu0 %v904
        %920 = vmatpush.bf16.msra.mxu0 %v903
        %921 = vmatpush.bf16.msra.mxu0 %v902
        %922 = vmatpush.bf16.msra.mxu0 %v901
        %923 = vmatpush.bf16.msra.mxu0 %v900
        %924 = vmatmul.bf16.gmra.mxu0 %v832
        %v925 = vpop.f32.mrf.mxu0
        %v926 = vadd.f32 %v866, %v925
        %v927 = vpop.f32.mrf.mxu0
        %v928 = vadd.f32 %v866, %v927
        %929 = vmatmul.bf16.gmra.mxu0 %v833
        %v930 = vpop.f32.mrf.mxu0
        %v931 = vadd.f32 %v866, %v930
        %v932 = vpop.f32.mrf.mxu0
        %v933 = vadd.f32 %v866, %v932
        %934 = vmatmul.bf16.gmra.mxu0 %v834
        %v935 = vpop.f32.mrf.mxu0
        %v936 = vadd.f32 %v866, %v935
        %v937 = vpop.f32.mrf.mxu0
        %v938 = vadd.f32 %v866, %v937
        %939 = vmatmul.bf16.gmra.mxu0 %v835
        %v940 = vpop.f32.mrf.mxu0
        %v941 = vadd.f32 %v866, %v940
        %v942 = vpop.f32.mrf.mxu0
        %v943 = vadd.f32 %v866, %v942
        %944 = vmatmul.bf16.gmra.mxu0 %v836
        %v945 = vpop.f32.mrf.mxu0
        %v946 = vadd.f32 %v866, %v945
        %v947 = vpop.f32.mrf.mxu0
        %v948 = vadd.f32 %v866, %v947
        %949 = vmatmul.bf16.gmra.mxu0 %v837
        %v950 = vpop.f32.mrf.mxu0
        %v951 = vadd.f32 %v866, %v950
        %v952 = vpop.f32.mrf.mxu0
        %v953 = vadd.f32 %v866, %v952
        %954 = vmatmul.bf16.gmra.mxu0 %v838
        %v955 = vpop.f32.mrf.mxu0
        %v956 = vadd.f32 %v866, %v955
        %v957 = vpop.f32.mrf.mxu0
        %v958 = vadd.f32 %v866, %v957
        %959 = vmatmul.bf16.gmra.mxu0 %v839
        %v960 = vpop.f32.mrf.mxu0
        %v961 = vadd.f32 %v866, %v960
        %v962 = vpop.f32.mrf.mxu0
        %v963 = vadd.f32 %v866, %v962
        %964 = vmatmul.bf16.gmra.mxu0 %v840
        %v965 = vpop.f32.mrf.mxu0
        %v966 = vadd.f32 %v866, %v965
        %v967 = vpop.f32.mrf.mxu0
        %v968 = vadd.f32 %v866, %v967
        %969 = vmatmul.bf16.gmra.mxu0 %v841
        %v970 = vpop.f32.mrf.mxu0
        %v971 = vadd.f32 %v866, %v970
        %v972 = vpop.f32.mrf.mxu0
        %v973 = vadd.f32 %v866, %v972
        %974 = vmatmul.bf16.gmra.mxu0 %v842
        %v975 = vpop.f32.mrf.mxu0
        %v976 = vadd.f32 %v866, %v975
        %v977 = vpop.f32.mrf.mxu0
        %v978 = vadd.f32 %v866, %v977
        %979 = vmatmul.bf16.gmra.mxu0 %v843
        %v980 = vpop.f32.mrf.mxu0
        %v981 = vadd.f32 %v866, %v980
        %v982 = vpop.f32.mrf.mxu0
        %v983 = vadd.f32 %v866, %v982
        %984 = vmatmul.bf16.gmra.mxu0 %v844
        %v985 = vpop.f32.mrf.mxu0
        %v986 = vadd.f32 %v866, %v985
        %v987 = vpop.f32.mrf.mxu0
        %v988 = vadd.f32 %v866, %v987
        %989 = vmatmul.bf16.gmra.mxu0 %v845
        %v990 = vpop.f32.mrf.mxu0
        %v991 = vadd.f32 %v866, %v990
        %v992 = vpop.f32.mrf.mxu0
        %v993 = vadd.f32 %v866, %v992
        %994 = vmatmul.bf16.gmra.mxu0 %v846
        %v995 = vpop.f32.mrf.mxu0
        %v996 = vadd.f32 %v866, %v995
        %v997 = vpop.f32.mrf.mxu0
        %v998 = vadd.f32 %v866, %v997
        %999 = vmatmul.bf16.gmra.mxu0 %v847
        %v1000 = vpop.f32.mrf.mxu0
        %v1001 = vadd.f32 %v866, %v1000
        %v1002 = vpop.f32.mrf.mxu0
        %v1003 = vadd.f32 %v866, %v1002
        %1004 = vdwg.mxu0
        %1005 = vst [vmem:[%s364] sm:$0xff] %v926
        %1006 = vst [vmem:[%s364 + $0x8] sm:$0xff] %v928
        %1007 = vst [vmem:[%s364 + $0x10] sm:$0xff] %v931
        %1008 = vst [vmem:[%s364 + $0x18] sm:$0xff] %v933
        %1009 = vst [vmem:[%s364 + $0x20] sm:$0xff] %v936
        %1010 = vst [vmem:[%s364 + $0x28] sm:$0xff] %v938
        %1011 = vst [vmem:[%s364 + $0x30] sm:$0xff] %v941
        %1012 = vst [vmem:[%s364 + $0x38] sm:$0xff] %v943
        %1013 = vst [vmem:[%s364 + $0x40] sm:$0xff] %v946
        %1014 = vst [vmem:[%s364 + $0x48] sm:$0xff] %v948
        %1015 = vst [vmem:[%s364 + $0x50] sm:$0xff] %v951
        %1016 = vst [vmem:[%s364 + $0x58] sm:$0xff] %v953
        %1017 = vst [vmem:[%s364 + $0x60] sm:$0xff] %v956
        %1018 = vst [vmem:[%s364 + $0x68] sm:$0xff] %v958
        %1019 = vst [vmem:[%s364 + $0x70] sm:$0xff] %v961
        %1020 = vst [vmem:[%s364 + $0x78] sm:$0xff] %v963
        %1021 = vst [vmem:[%s364 + $0x80] sm:$0xff] %v966
        %1022 = vst [vmem:[%s364 + $0x88] sm:$0xff] %v968
        %1023 = vst [vmem:[%s364 + $0x90] sm:$0xff] %v971
        %1024 = vst [vmem:[%s364 + $0x98] sm:$0xff] %v973
        %1025 = vst [vmem:[%s364 + $0xa0] sm:$0xff] %v976
        %1026 = vst [vmem:[%s364 + $0xa8] sm:$0xff] %v978
        %1027 = vst [vmem:[%s364 + $0xb0] sm:$0xff] %v981
        %1028 = vst [vmem:[%s364 + $0xb8] sm:$0xff] %v983
        %1029 = vst [vmem:[%s364 + $0xc0] sm:$0xff] %v986
        %1030 = vst [vmem:[%s364 + $0xc8] sm:$0xff] %v988
        %1031 = vst [vmem:[%s364 + $0xd0] sm:$0xff] %v991
        %1032 = vst [vmem:[%s364 + $0xd8] sm:$0xff] %v993
        %1033 = vst [vmem:[%s364 + $0xe0] sm:$0xff] %v996
        %1034 = vst [vmem:[%s364 + $0xe8] sm:$0xff] %v998
        %1035 = vst [vmem:[%s364 + $0xf0] sm:$0xff] %v1001
        %1036 = vst [vmem:[%s364 + $0xf8] sm:$0xff] %v1003
        %s1037 = sand.u32 %s225, 1
        %s1038 = scalar_lea.sflag [#allocation3], %s1037
        %s1039 = sand.u32 %s225, 1
        %s1040 = smul.addr %s1039, 256
        %s1041 = scalar_lea.vmem [#allocation2], %s1040
        // Predicated region
        $region49: #{tpu_custom_call.1} parent=47 // pred_check
          %p1042 = pneg %p235
        $region50: #{tpu_custom_call.1} parent=47 // pred_check_branch
          %1044 = sbr.rel (%p1042) target = $region52
        $region51: #{tpu_custom_call.1} parent=47 // pred_region
          %s1045 = smul.u32 32, %s26
          %1047 = vsyncadd %s1038, 0
          %s1048 = smul.addr %s25, 32
          %s1049 = sadd.s32 %s1045, %s1048
          %s1050 = smul.addr %s1049, 8
          %s1051 = scalar_lea.hbm %s7, %s1050
          %s1052 = sshll.u32 %s1041, 4
          %s1053 = int_to_ptr.vmem [resolvable:$true] %s1052
          %s1054 = sshll.u32 %s1051, 4
          %s1055 = int_to_ptr.hbm [resolvable:$true] %s1054
          %1060 = dma.vmem_to_hbm [thread:$0]  %s1053, 4096, %s1055, %s1038, 128, 128, 8
        $region52: #{tpu_custom_call.1} parent=47 // pred_fallthru
          _
      $region48: #{tpu_custom_call.1} parent=5 // pred_fallthru
        _
      %p1061 = scmp.le.s32.totalorder 2, %s16
      // Predicated region
      $region53: #{tpu_custom_call.1} parent=5 // pred_check
        %p1062 = pneg %p1061
      $region54: #{tpu_custom_call.1} parent=5 // pred_check_branch
        %1064 = sbr.rel (%p1062) target = $region56
      $region55: #{tpu_custom_call.1} parent=5 // pred_region
        %s1065 = ssub.s32 %s16, 2
        // Predicated region
        $region57: #{tpu_custom_call.1} parent=55 // pred_check
          %p1066 = pneg %p241
        $region58: #{tpu_custom_call.1} parent=55 // pred_check_branch
          %1068 = sbr.rel (%p1066) target = $region60
        $region59: #{tpu_custom_call.1} parent=55 // pred_region
          %s1069 = sand.u32 %s226, 1
          %s1070 = scalar_lea.sflag [#allocation3], %s1069
          %s1071 = sand.u32 %s226, 1
          %s1072 = smul.addr %s1071, 256
          %s1073 = scalar_lea.vmem [#allocation2], %s1072
          %1075 = dma.done %s1070, 4096
        $region60: #{tpu_custom_call.1} parent=55 // pred_fallthru
          _
      $region56: #{tpu_custom_call.1} parent=5 // pred_fallthru
        _
    $region6: #{tpu_custom_call.1} parent=1 // loop_footer
      %s20 = sadd.s32 1, %s16
    $region7: #{tpu_custom_call.1} parent=1 // loop_footer_branch
      %15 = sbr.rel target = $region3
    $region8: #{tpu_custom_call.1} parent=1 // loop_exit
      _
    %1076 = vsyncpa [#allocation3], 1
    %s1077 = scalar_lea.sflag [#allocation3], 1
    %1078 = vsyncpa %s1077, 1

</llo_original>
